<compile_context>
chip_gen: v7x
topology: tpu7x:2x2x1
jax: 0.10.0
libtpu: 0.0.40
codegen_flags: <defaults>
</compile_context>

<pallas_src>
import functools

import jax
import jax.numpy as jnp
from jax.experimental import pallas as pl
from jax.experimental.pallas import tpu as pltpu

BN_EPS = 1e-5


# ---------------------------------------------------------------------------
# Pass 1: batch-tiled  h = x @ W1  (bias dropped: cancels under training-mode
# BN) plus full-batch per-feature sum / sum-of-squares accumulators.
# ---------------------------------------------------------------------------
def _hidden_stats_kernel(x_ref, w1_ref, h_ref, sum_ref, ssq_ref):
    @pl.when(pl.program_id(0) == 0)
    def _init():
        sum_ref[...] = jnp.zeros_like(sum_ref)
        ssq_ref[...] = jnp.zeros_like(ssq_ref)

    h = jnp.dot(x_ref[...], w1_ref[...], preferred_element_type=jnp.float32)
    h_ref[...] = h
    # Single-pass stats: accumulate sum(h) and sum(h*h); variance is formed
    # later as E[h^2] - mean^2 (f32 accumulation — fine at these magnitudes).
    sum_ref[...] += jnp.sum(h, axis=0, keepdims=True)
    ssq_ref[...] += jnp.sum(h * h, axis=0, keepdims=True)


# ---------------------------------------------------------------------------
# Pass 2: batch-tiled  out = relu(bn(h)) @ W2 + b2, BN folded into scale/shift.
# ---------------------------------------------------------------------------
def _normalize_project_kernel(h_ref, sum_ref, ssq_ref, gamma_ref, beta_ref,
                              w2_ref, b2_ref, o_ref, *, inv_batch):
    mean = sum_ref[...] * inv_batch                       # (1, H)
    var = ssq_ref[...] * inv_batch - mean * mean          # biased, like PyTorch fwd
    inv_std = jax.lax.rsqrt(var + BN_EPS)
    scale = gamma_ref[...] * inv_std                      # (1, H)
    shift = beta_ref[...] - mean * scale                  # (1, H)

    h = jnp.maximum(h_ref[...] * scale + shift, 0.0)      # BN + ReLU: 2 VPU passes
    out = jnp.dot(h.astype(w2_ref.dtype), w2_ref[...],
                  preferred_element_type=jnp.float32)
    o_ref[...] = (out + b2_ref[...]).astype(o_ref.dtype)


def mlp_forward(x, w1, b1, gamma, beta, w2, b2, *, block_b=None,
                compute_dtype=None):
    """x: (B, dim) f32 -> (B, projection_size) f32.

    `b1` is accepted for interface parity with the PyTorch module but is not
    used: a per-feature constant bias cancels exactly when training-mode
    BatchNorm subtracts the batch mean, so skipping it saves a full (B, H)
    VPU pass and one input DMA with no change to the result.
    """
    del b1  # exact algebraic cancellation under training-mode BatchNorm1d
    B, D = x.shape
    H = w1.shape[1]
    P = w2.shape[1]

    if block_b is None:
        block_b = 256 if B % 256 == 0 else (128 if B % 128 == 0 else B)
    assert B % block_b == 0, "batch must be divisible by the batch tile"
    nb = B // block_b

    # Lane-dense output: pad projection dim to a multiple of 128 so the final
    # stores are full (unmasked) vector stores; slice the padding off below.
    Pp = ((P + 127) // 128) * 128
    if Pp != P:
        w2 = jnp.pad(w2, ((0, 0), (0, Pp - P)))
        b2 = jnp.pad(b2, ((0, 0), (0, Pp - P)))

    if compute_dtype is not None:
        # bf16 matmul inputs (v6e/v7x); accumulation stays f32 and all
        # BN / ReLU elementwise math stays f32.
        x = x.astype(compute_dtype)
        w1 = w1.astype(compute_dtype)
        w2 = w2.astype(compute_dtype)

    f32 = 4
    # Explicit VMEM budget: resident weights + double-buffered tiles, clamped
    # so the same tiling also fits v7x's 64 MiB physical VMEM.
    est1 = f32 * (D * H + 2 * block_b * D + 2 * block_b * H + 4 * H)
    est2 = f32 * (H * Pp + 2 * block_b * H + 2 * block_b * Pp + 10 * H + 2 * Pp)
    vmem_limit = int(min(max(2 * max(est1, est2), 32 * 1024 * 1024),
                         64 * 1024 * 1024))

    # ---- Pass 1: hidden activations + full-batch BN statistics -------------
    h, s, ss = pl.pallas_call(
        _hidden_stats_kernel,
        grid=(nb,),
        in_specs=[
            pl.BlockSpec((block_b, D), lambda i: (i, 0)),   # x tile
            pl.BlockSpec((D, H), lambda i: (0, 0)),         # W1 (resident)
        ],
        out_specs=(
            pl.BlockSpec((block_b, H), lambda i: (i, 0)),   # h tile
            pl.BlockSpec((1, H), lambda i: (0, 0)),         # sum   (accumulator)
            pl.BlockSpec((1, H), lambda i: (0, 0)),         # sumsq (accumulator)
        ),
        out_shape=(
            jax.ShapeDtypeStruct((B, H), jnp.float32),
            jax.ShapeDtypeStruct((1, H), jnp.float32),
            jax.ShapeDtypeStruct((1, H), jnp.float32),
        ),
        compiler_params=pltpu.CompilerParams(
            dimension_semantics=("arbitrary",),   # stats accumulate across tiles
            vmem_limit_bytes=vmem_limit),
        cost_estimate=pl.CostEstimate(
            flops=2 * B * D * H,
            transcendentals=0,
            bytes_accessed=f32 * (B * D + D * H + B * H + 2 * H)),
    )(x, w1)

    # ---- Pass 2: fused BN scale/shift + ReLU + Linear-2 ---------------------
    out = pl.pallas_call(
        functools.partial(_normalize_project_kernel, inv_batch=1.0 / B),
        grid=(nb,),
        in_specs=[
            pl.BlockSpec((block_b, H), lambda i: (i, 0)),   # h tile
            pl.BlockSpec((1, H), lambda i: (0, 0)),         # sum
            pl.BlockSpec((1, H), lambda i: (0, 0)),         # sumsq
            pl.BlockSpec((1, H), lambda i: (0, 0)),         # gamma
            pl.BlockSpec((1, H), lambda i: (0, 0)),         # beta
            pl.BlockSpec((H, Pp), lambda i: (0, 0)),        # W2 (resident, padded)
            pl.BlockSpec((1, Pp), lambda i: (0, 0)),        # b2 (padded)
        ],
        out_specs=pl.BlockSpec((block_b, Pp), lambda i: (i, 0)),
        out_shape=jax.ShapeDtypeStruct((B, Pp), jnp.float32),
        compiler_params=pltpu.CompilerParams(
            dimension_semantics=("parallel",),    # batch tiles independent here
            vmem_limit_bytes=vmem_limit),
        cost_estimate=pl.CostEstimate(
            flops=2 * B * H * Pp + 6 * B * H,
            transcendentals=H,
            bytes_accessed=f32 * (B * H + H * Pp + B * Pp + 6 * H + 2 * Pp)),
    )(h, s, ss, gamma, beta, w2, b2)

    return out[:, :P]


def init_params(key, dim, hidden_size, projection_size):
    """Deterministic PyTorch-style (Kaiming-uniform-ish) init."""
    k1, k2, k3, k4 = jax.random.split(key, 4)
    bound1 = 1.0 / jnp.sqrt(dim)
    w1 = jax.random.uniform(k1, (dim, hidden_size), jnp.float32, -bound1, bound1)
    b1 = jax.random.uniform(k2, (1, hidden_size), jnp.float32, -bound1, bound1)
    gamma = jnp.ones((1, hidden_size), jnp.float32)   # BatchNorm1d weight
    beta = jnp.zeros((1, hidden_size), jnp.float32)   # BatchNorm1d bias
    bound2 = 1.0 / jnp.sqrt(hidden_size)
    w2 = jax.random.uniform(k3, (hidden_size, projection_size), jnp.float32, -bound2, bound2)
    b2 = jax.random.uniform(k4, (1, projection_size), jnp.float32, -bound2, bound2)
    return w1, b1, gamma, beta, w2, b2


def mlp_reference(x, w1, b1, gamma, beta, w2, b2):
    """Pure-JAX reference matching PyTorch forward (training-mode BN)."""
    h = x @ w1 + b1
    mean = jnp.mean(h, axis=0, keepdims=True)
    var = jnp.mean((h - mean) ** 2, axis=0, keepdims=True)
    h = (h - mean) / jnp.sqrt(var + BN_EPS) * gamma + beta
    h = jnp.maximum(h, 0.0)
    return h @ w2 + b2


if __name__ == "__main__":
    # Small shapes consistent with MLP(dim, projection_size, hidden_size).
    B, DIM, HIDDEN, PROJ = 16, 64, 128, 32

    key = jax.random.PRNGKey(0)
    kx, kp = jax.random.split(key)
    x = jax.random.normal(kx, (B, DIM), jnp.float32)
    params = init_params(kp, DIM, HIDDEN, PROJ)

    # block_b=8 exercises the multi-tile grid + cross-tile BN-stats accumulator.
    out = mlp_forward(x, *params, block_b=8)
    out = jax.block_until_ready(out)

    ref = mlp_reference(x, *params)
    assert out.shape == (B, PROJ)
    max_err = float(jnp.max(jnp.abs(out - ref)))
    assert jnp.allclose(out, ref, atol=1e-3, rtol=1e-3), f"mismatch vs reference: {max_err}"

    print("KERNEL_OK")
</pallas_src>

<mosaic_0001>
module attributes {stable_mosaic.version = 11 : i64} {
  func.func @_hidden_stats_kernel(%arg0: i32, %arg1: memref<8x64xf32, #tpu.memory_space<vmem>>, %arg2: memref<64x128xf32, #tpu.memory_space<vmem>>, %arg3: memref<8x128xf32, #tpu.memory_space<vmem>>, %arg4: memref<1x128xf32, #tpu.memory_space<vmem>>, %arg5: memref<1x128xf32, #tpu.memory_space<vmem>>) attributes {dimension_semantics = [#tpu.dimension_semantics<arbitrary>], iteration_bounds = array<i64: 2>, scalar_prefetch = 0 : i64, scratch_operands = 0 : i64, tpu.core_type = #tpu.core_type<tc>, window_params = [{transform_indices = @transform_0, window_bounds = array<i64: 8, 64>}, {pipeline_mode = #tpu.pipeline_mode<synchronous>, transform_indices = @transform_1, window_bounds = array<i64: 64, 128>}, {transform_indices = @transform_2, window_bounds = array<i64: 8, 128>}, {pipeline_mode = #tpu.pipeline_mode<synchronous>, transform_indices = @transform_3, window_bounds = array<i64: 1, 128>}, {pipeline_mode = #tpu.pipeline_mode<synchronous>, transform_indices = @transform_4, window_bounds = array<i64: 1, 128>}]} {
    %c0_i32 = arith.constant 0 : i32
    %0 = arith.cmpi eq, %arg0, %c0_i32 : i32
    %1 = arith.extui %0 : i1 to i32
    %c0_i32_0 = arith.constant 0 : i32
    %2 = arith.cmpi ne, %1, %c0_i32_0 : i32
    scf.if %2 {
      %cst_16 = arith.constant 0.000000e+00 : f32
      %18 = vector.broadcast %cst_16 : f32 to vector<1x128xf32>
      %c0_17 = arith.constant 0 : index
      %c0_18 = arith.constant 0 : index
      %19 = vector.load %arg4[%c0_17, %c0_18] : memref<1x128xf32, #tpu.memory_space<vmem>>, vector<1x128xf32>
      tpu.vector_store %arg4[%c0_17, %c0_18], %18 {strides = array<i32>} : memref<1x128xf32, #tpu.memory_space<vmem>>, vector<1x128xf32>,
      %cst_19 = arith.constant 0.000000e+00 : f32
      %20 = vector.broadcast %cst_19 : f32 to vector<1x128xf32>
      %c0_20 = arith.constant 0 : index
      %c0_21 = arith.constant 0 : index
      %21 = vector.load %arg5[%c0_20, %c0_21] : memref<1x128xf32, #tpu.memory_space<vmem>>, vector<1x128xf32>
      tpu.vector_store %arg5[%c0_20, %c0_21], %20 {strides = array<i32>} : memref<1x128xf32, #tpu.memory_space<vmem>>, vector<1x128xf32>,
    } else {
    }
    %c0 = arith.constant 0 : index
    %c0_1 = arith.constant 0 : index
    %3 = vector.load %arg1[%c0, %c0_1] : memref<8x64xf32, #tpu.memory_space<vmem>>, vector<8x64xf32>
    %c0_2 = arith.constant 0 : index
    %c0_3 = arith.constant 0 : index
    %4 = vector.load %arg2[%c0_2, %c0_3] : memref<64x128xf32, #tpu.memory_space<vmem>>, vector<64x128xf32>
    %cst = arith.constant dense<0.000000e+00> : vector<8x128xf32>
    %5 = tpu.matmul %3, %4, %cst {dimension_numbers = #tpu.dot_dimension_numbers<[1], [0], [0], [1], [0, 0, 1, 1], [], []>} : vector<8x64xf32>, vector<64x128xf32>, vector<8x128xf32> -> vector<8x128xf32>
    %c0_4 = arith.constant 0 : index
    %c0_5 = arith.constant 0 : index
    %6 = vector.load %arg3[%c0_4, %c0_5] : memref<8x128xf32, #tpu.memory_space<vmem>>, vector<8x128xf32>
    tpu.vector_store %arg3[%c0_4, %c0_5], %5 {strides = array<i32>} : memref<8x128xf32, #tpu.memory_space<vmem>>, vector<8x128xf32>,
    %c0_6 = arith.constant 0 : index
    %c0_7 = arith.constant 0 : index
    %7 = vector.load %arg4[%c0_6, %c0_7] : memref<1x128xf32, #tpu.memory_space<vmem>>, vector<1x128xf32>
    %cst_8 = arith.constant dense<0.000000e+00> : vector<128xf32>
    %8 = vector.multi_reduction <add>, %5, %cst_8 [0] : vector<8x128xf32> to vector<128xf32>
    %9 = vector.shape_cast %8 : vector<128xf32> to vector<1x128xf32>
    %10 = arith.addf %7, %9 : vector<1x128xf32>
    %c0_9 = arith.constant 0 : index
    %c0_10 = arith.constant 0 : index
    %11 = vector.load %arg4[%c0_9, %c0_10] : memref<1x128xf32, #tpu.memory_space<vmem>>, vector<1x128xf32>
    tpu.vector_store %arg4[%c0_9, %c0_10], %10 {strides = array<i32>} : memref<1x128xf32, #tpu.memory_space<vmem>>, vector<1x128xf32>,
    %c0_11 = arith.constant 0 : index
    %c0_12 = arith.constant 0 : index
    %12 = vector.load %arg5[%c0_11, %c0_12] : memref<1x128xf32, #tpu.memory_space<vmem>>, vector<1x128xf32>
    %13 = arith.mulf %5, %5 : vector<8x128xf32>
    %cst_13 = arith.constant dense<0.000000e+00> : vector<128xf32>
    %14 = vector.multi_reduction <add>, %13, %cst_13 [0] : vector<8x128xf32> to vector<128xf32>
    %15 = vector.shape_cast %14 : vector<128xf32> to vector<1x128xf32>
    %16 = arith.addf %12, %15 : vector<1x128xf32>
    %c0_14 = arith.constant 0 : index
    %c0_15 = arith.constant 0 : index
    %17 = vector.load %arg5[%c0_14, %c0_15] : memref<1x128xf32, #tpu.memory_space<vmem>>, vector<1x128xf32>
    tpu.vector_store %arg5[%c0_14, %c0_15], %16 {strides = array<i32>} : memref<1x128xf32, #tpu.memory_space<vmem>>, vector<1x128xf32>,
    return
  }
  func.func @transform_0(%arg0: i32) -> (i32, i32) {
    %c0_i32 = arith.constant 0 : i32
    %c0_i32_0 = arith.constant 0 : i32
    return %arg0, %c0_i32 : i32, i32
  }
  func.func @transform_1(%arg0: i32) -> (i32, i32) {
    %c0_i32 = arith.constant 0 : i32
    %c0_i32_0 = arith.constant 0 : i32
    %c0_i32_1 = arith.constant 0 : i32
    return %c0_i32, %c0_i32_0 : i32, i32
  }
  func.func @transform_2(%arg0: i32) -> (i32, i32) {
    %c0_i32 = arith.constant 0 : i32
    %c0_i32_0 = arith.constant 0 : i32
    return %arg0, %c0_i32 : i32, i32
  }
  func.func @transform_3(%arg0: i32) -> (i32, i32) {
    %c0_i32 = arith.constant 0 : i32
    %c0_i32_0 = arith.constant 0 : i32
    %c0_i32_1 = arith.constant 0 : i32
    return %c0_i32, %c0_i32_0 : i32, i32
  }
  func.func @transform_4(%arg0: i32) -> (i32, i32) {
    %c0_i32 = arith.constant 0 : i32
    %c0_i32_0 = arith.constant 0 : i32
    %c0_i32_1 = arith.constant 0 : i32
    return %c0_i32, %c0_i32_0 : i32, i32
  }
}

</mosaic_0001>

<llo_original>
// kernel: tpu_custom_call.1
$region0: #{tpu_custom_call.1}
  #allocation0 [shape = 'u32[]', space=smem, size = 0x4, offset = 0x4, fixed_abs, tag = 'smem constant byte address 0x4 - core index']
  #allocation1 [shape = 'u32[144,128]{1,0:T(1,128)}', space=vmem, size = 0x12000, scoped, tag = 'internal scratch']
  %s0 = inlined_call_operand.hbm [shape: f32[16,64], index: 0, kind: input, shape index: {}]
  %s1 = inlined_call_operand.hbm [shape: f32[64,128], index: 1, kind: input, shape index: {}]
  %s2 = inlined_call_operand.hbm [shape: f32[16,128], index: 2, kind: output, shape index: {0}]
  %s3 = inlined_call_operand.hbm [shape: f32[1,128], index: 3, kind: output, shape index: {1}]
  %s4 = inlined_call_operand.hbm [shape: f32[1,128], index: 4, kind: output, shape index: {2}]
  %5 = xla_tuple %s2, %s3, %s4
  %s6 = sld [smem:[#allocation0]]
  $region69: #{tpu_custom_call.1} parent=0
    _
  %s8 = ssub.s32 1, %s6
  %s9 = scalar_select 0, %s8, %s6
  $region1: #{tpu_custom_call.1} parent=0
    #allocation2 [shape = 'u8[8192]{0}', space=vmem, size = 0x2000, scoped, tag = 'input window, operand 0']
    #allocation3 [shape = 's32[2]{0}', space=sflag, size = 0x8, scoped, tag = 'scoped memory for tpu_custom_call.1']
    #allocation4 [shape = 's32[2]{0}', space=sflag, size = 0x8, scoped, tag = 'scoped memory for tpu_custom_call.1']
    #allocation5 [shape = 'u8[32768]{0}', space=vmem, size = 0x8000, scoped, tag = 'input window, operand 1, single buffered']
    #allocation6 [shape = 's32[1]{0}', space=sflag, size = 0x4, scoped, tag = 'scoped memory for tpu_custom_call.1']
    #allocation7 [shape = 'u8[8192]{0}', space=vmem, size = 0x2000, scoped, tag = 'output window, operand 0']
    #allocation8 [shape = 'u8[512]{0}', space=vmem, size = 0x400, scoped, tag = 'output window, operand 1, single buffered']
    #allocation9 [shape = 's32[1]{0}', space=sflag, size = 0x4, scoped, tag = 'scoped memory for tpu_custom_call.1']
    #allocation10 [shape = 'u8[512]{0}', space=vmem, size = 0x400, scoped, tag = 'output window, operand 2, single buffered']
    %10 = vsyncpa [#allocation3], 0
    %s11 = scalar_lea.sflag [#allocation3], 1
    %12 = vsyncpa %s11, 0
    %13 = vsyncpa [#allocation6], 0
    %14 = vsyncpa [#allocation4], 0
    %s15 = scalar_lea.sflag [#allocation4], 1
    %16 = vsyncpa %s15, 0
    %17 = vsyncpa [#allocation9], 0
    loop: start=0, step=1, limit=4
    $region2: #{tpu_custom_call.1} parent=1 // loop_pre_header
      _
    $region3: #{tpu_custom_call.1} parent=1 // loop_header
      %s19 = sphi 0, %s23
      %p20 = scmp.ge.s32.totalorder %s19, 4
      %s29 = sphi 0, %s31
      %s32 = sphi 0, %s29
      %s33 = sphi 0, %s32
      %s49 = sphi 0, %s33
      %s53 = sphi 0, %s53
      %s55 = sphi 0, %s53
      %s56 = sphi 0, %s55
      %s70 = sphi 0, %s56
      %s76 = sphi 0, %s78
      %s79 = sphi 0, %s76
      %s80 = sphi 0, %s79
      %s96 = sphi 0, %s80
      %s100 = sphi 0, %s100
      %s102 = sphi 0, %s100
      %s103 = sphi 0, %s102
      %s117 = sphi 0, %s103
      %s121 = sphi 0, %s121
      %s123 = sphi 0, %s121
      %s124 = sphi 0, %s123
      %s138 = sphi 0, %s124
    $region4: #{tpu_custom_call.1} parent=1 // loop_header_branch
      %22 = sbr.rel (%p20) target = $region8
    $region5: #{tpu_custom_call.1} parent=1 // loop_body
      %s24 = ssub.s32 %s19, 1
      %s25 = ssub.s32 %s19, 2
      %s26 = sadd.s32 %s19, 1
      %s27 = ssub.s32 %s19, %s26
      %p28 = scmp.eq.s32.totalorder %s27, 0
      %s30 = sadd.s32 %s29, 1
      %s31 = scalar_select %p28, %s29, %s30
      %p34 = pneg %p28
      %p35 = scmp.eq.s32.totalorder %s19, 1
      %p36 = por %p34, %p35
      %p37 = scmp.ne.s32.totalorder %s29, %s32
      %p38 = scmp.eq.s32.totalorder %s19, 0
      %p39 = por %p37, %p38
      %p40 = scmp.ne.s32.totalorder %s29, %s32
      %p41 = scmp.eq.s32.totalorder %s24, 1
      %p42 = por %p40, %p41
      %p43 = scmp.ne.s32.totalorder %s32, %s33
      %p44 = scmp.eq.s32.totalorder %s24, 0
      %p45 = por %p43, %p44
      %p46 = scmp.ne.s32.totalorder %s32, %s33
      %p47 = scmp.eq.s32.totalorder %s25, 1
      %p48 = por %p46, %p47
      %p50 = scmp.ne.s32.totalorder %s33, %s49
      %p51 = scmp.eq.s32.totalorder %s25, 0
      %p52 = por %p50, %p51
      %s54 = sadd.s32 %s53, 1
      %p57 = scmp.eq.s32.totalorder %s19, 1
      %p58 = scmp.ne.s32.totalorder %s53, %s55
      %p59 = scmp.eq.s32.totalorder %s19, 0
      %p60 = por %p58, %p59
      %p61 = scmp.ne.s32.totalorder %s53, %s55
      %p62 = scmp.eq.s32.totalorder %s24, 1
      %p63 = por %p61, %p62
      %p64 = scmp.ne.s32.totalorder %s55, %s56
      %p65 = scmp.eq.s32.totalorder %s24, 0
      %p66 = por %p64, %p65
      %p67 = scmp.ne.s32.totalorder %s55, %s56
      %p68 = scmp.eq.s32.totalorder %s25, 1
      %p69 = por %p67, %p68
      %p71 = scmp.ne.s32.totalorder %s56, %s70
      %p72 = scmp.eq.s32.totalorder %s25, 0
      %p73 = por %p71, %p72
      %s74 = ssub.s32 %s19, %s26
      %p75 = scmp.eq.s32.totalorder %s74, 0
      %s77 = sadd.s32 %s76, 1
      %s78 = scalar_select %p75, %s76, %s77
      %p81 = pneg %p75
      %p82 = scmp.eq.s32.totalorder %s19, 1
      %p83 = por %p81, %p82
      %p84 = scmp.ne.s32.totalorder %s76, %s79
      %p85 = scmp.eq.s32.totalorder %s19, 0
      %p86 = por %p84, %p85
      %p87 = scmp.ne.s32.totalorder %s76, %s79
      %p88 = scmp.eq.s32.totalorder %s24, 1
      %p89 = por %p87, %p88
      %p90 = scmp.ne.s32.totalorder %s79, %s80
      %p91 = scmp.eq.s32.totalorder %s24, 0
      %p92 = por %p90, %p91
      %p93 = scmp.ne.s32.totalorder %s79, %s80
      %p94 = scmp.eq.s32.totalorder %s25, 1
      %p95 = por %p93, %p94
      %p97 = scmp.ne.s32.totalorder %s80, %s96
      %p98 = scmp.eq.s32.totalorder %s25, 0
      %p99 = por %p97, %p98
      %s101 = sadd.s32 %s100, 1
      %p104 = scmp.eq.s32.totalorder %s19, 1
      %p105 = scmp.ne.s32.totalorder %s100, %s102
      %p106 = scmp.eq.s32.totalorder %s19, 0
      %p107 = por %p105, %p106
      %p108 = scmp.ne.s32.totalorder %s100, %s102
      %p109 = scmp.eq.s32.totalorder %s24, 1
      %p110 = por %p108, %p109
      %p111 = scmp.ne.s32.totalorder %s102, %s103
      %p112 = scmp.eq.s32.totalorder %s24, 0
      %p113 = por %p111, %p112
      %p114 = scmp.ne.s32.totalorder %s102, %s103
      %p115 = scmp.eq.s32.totalorder %s25, 1
      %p116 = por %p114, %p115
      %p118 = scmp.ne.s32.totalorder %s103, %s117
      %p119 = scmp.eq.s32.totalorder %s25, 0
      %p120 = por %p118, %p119
      %s122 = sadd.s32 %s121, 1
      %p125 = scmp.eq.s32.totalorder %s19, 1
      %p126 = scmp.ne.s32.totalorder %s121, %s123
      %p127 = scmp.eq.s32.totalorder %s19, 0
      %p128 = por %p126, %p127
      %p129 = scmp.ne.s32.totalorder %s121, %s123
      %p130 = scmp.eq.s32.totalorder %s24, 1
      %p131 = por %p129, %p130
      %p132 = scmp.ne.s32.totalorder %s123, %s124
      %p133 = scmp.eq.s32.totalorder %s24, 0
      %p134 = por %p132, %p133
      %p135 = scmp.ne.s32.totalorder %s123, %s124
      %p136 = scmp.eq.s32.totalorder %s25, 1
      %p137 = por %p135, %p136
      %p139 = scmp.ne.s32.totalorder %s124, %s138
      %p140 = scmp.eq.s32.totalorder %s25, 0
      %p141 = por %p139, %p140
      %p142 = scmp.le.s32.totalorder 1, %s19
      %p143 = scmp.lt.s32.totalorder %s19, 3
      %p144 = pnand %p142, %p143
      %p145 = pneg %p144
      // Predicated region
      $region9: #{tpu_custom_call.1} parent=5 // pred_check
        _
      $region10: #{tpu_custom_call.1} parent=5 // pred_check_branch
        %147 = sbr.rel (%p144) target = $region12
      $region11: #{tpu_custom_call.1} parent=5 // pred_region
        %s148 = ssub.s32 %s19, 1
        // Predicated region
        $region13: #{tpu_custom_call.1} parent=11 // pred_check
          %p149 = pneg %p66
        $region14: #{tpu_custom_call.1} parent=11 // pred_check_branch
          %151 = sbr.rel (%p149) target = $region16
        $region15: #{tpu_custom_call.1} parent=11 // pred_region
          %s153 = ssub.s32 1024, 1024
          %154 = vsyncadd [#allocation6], %s153
          %s155 = sshll.u32 [#allocation5], 4
          %s156 = int_to_ptr.vmem [resolvable:$true] %s155
          %161 = dma.hbm_to_vmem [thread:$0]  %s1, 1024, %s156, [#allocation6], 128, 128, 8
        $region16: #{tpu_custom_call.1} parent=11 // pred_fallthru
          _
      $region12: #{tpu_custom_call.1} parent=5 // pred_fallthru
        _
      %p162 = scmp.lt.s32.totalorder %s19, 2
      // Predicated region
      $region17: #{tpu_custom_call.1} parent=5 // pred_check
        %p163 = pneg %p162
      $region18: #{tpu_custom_call.1} parent=5 // pred_check_branch
        %165 = sbr.rel (%p163) target = $region20
      $region19: #{tpu_custom_call.1} parent=5 // pred_region
        // Predicated region
        $region21: #{tpu_custom_call.1} parent=19 // pred_check
          %p166 = pneg %p39
        $region22: #{tpu_custom_call.1} parent=19 // pred_check_branch
          %168 = sbr.rel (%p166) target = $region24
        $region23: #{tpu_custom_call.1} parent=19 // pred_region
          %s169 = sand.u32 %s29, 1
          %s170 = scalar_lea.sflag [#allocation3], %s169
          %s171 = sand.u32 %s29, 1
          %s172 = smul.addr %s171, 8
          %s173 = scalar_lea.vmem [#allocation2], %s172
          %s175 = ssub.s32 128, 128
          %176 = vsyncadd %s170, %s175
          %s177 = smul.addr %s19, 128
          %s178 = scalar_lea.hbm %s0, %s177
          %s180 = sshll.u32 %s173, 4
          %s181 = int_to_ptr.vmem [resolvable:$true] %s180
          %183 = dma.hbm_to_vmem [thread:$0]  %s178, 128, %s181, %s170
        $region24: #{tpu_custom_call.1} parent=19 // pred_fallthru
          _
      $region20: #{tpu_custom_call.1} parent=5 // pred_fallthru
        _
      %p184 = scmp.le.s32.totalorder 1, %s19
      %p185 = scmp.lt.s32.totalorder %s19, 3
      %p186 = pnand %p184, %p185
      %p187 = pneg %p186
      // Predicated region
      $region25: #{tpu_custom_call.1} parent=5 // pred_check
        _
      $region26: #{tpu_custom_call.1} parent=5 // pred_check_branch
        %189 = sbr.rel (%p186) target = $region28
      $region27: #{tpu_custom_call.1} parent=5 // pred_region
        %s190 = ssub.s32 %s19, 1
        %s191 = sand.u32 %s32, 1
        %s192 = scalar_lea.sflag [#allocation3], %s191
        %s193 = sand.u32 %s32, 1
        %s194 = smul.addr %s193, 8
        %s195 = scalar_lea.vmem [#allocation2], %s194
        // Predicated region
        $region29: #{tpu_custom_call.1} parent=27 // pred_check
          %p196 = pneg %p45
        $region30: #{tpu_custom_call.1} parent=27 // pred_check_branch
          %198 = sbr.rel (%p196) target = $region32
        $region31: #{tpu_custom_call.1} parent=27 // pred_region
          %199 = dma.done %s192, 128
        $region32: #{tpu_custom_call.1} parent=27 // pred_fallthru
          _
        // Predicated region
        $region33: #{tpu_custom_call.1} parent=27 // pred_check
          %p200 = pneg %p66
        $region34: #{tpu_custom_call.1} parent=27 // pred_check_branch
          %202 = sbr.rel (%p200) target = $region36
        $region35: #{tpu_custom_call.1} parent=27 // pred_region
          %203 = dma.done [#allocation6], 1024
        $region36: #{tpu_custom_call.1} parent=27 // pred_fallthru
          _
        %s204 = sand.u32 %s32, 1
        %s205 = scalar_lea.sflag [#allocation3], %s204
        %s206 = sand.u32 %s32, 1
        %s207 = smul.addr %s206, 8
        %s208 = scalar_lea.vmem [#allocation2], %s207
        %p209 = pneg %p45
        %p210 = pneg %p42
        %p211 = pneg %p66
        %p212 = pneg %p63
        %p213 = pneg %p92
        %p214 = pneg %p89
        %s215 = sand.u32 %s79, 1
        %s216 = scalar_lea.sflag [#allocation4], %s215
        %s217 = sand.u32 %s79, 1
        %s218 = smul.addr %s217, 8
        %s219 = scalar_lea.vmem [#allocation7], %s218
        %p220 = pneg %p113
        %p221 = pneg %p110
        %p222 = pneg %p134
        %p223 = pneg %p131
        %p224 = scmp.eq.s32.totalorder %s24, 0
        // Predicated region
        $region37: #{tpu_custom_call.1} parent=27 // pred_check
          %p225 = pneg %p224
        $region38: #{tpu_custom_call.1} parent=27 // pred_check_branch
          %227 = sbr.rel (%p225) target = $region40
        $region39: #{tpu_custom_call.1} parent=27 // pred_region
          %228 = vst [vmem:[#allocation8] sm:$0x1] 0.0
          %229 = vst [vmem:[#allocation10] sm:$0x1] 0.0
        $region40: #{tpu_custom_call.1} parent=27 // pred_fallthru
          _
        %v230 = vld [vmem:[%s195] sm:$0xff]
        %v231 = vld [vmem:[#allocation5] sm:$0xff]
        %v232 = vld [vmem:[#allocation5 + $0x8] sm:$0xff]
        %v233 = vld [vmem:[#allocation5 + $0x10] sm:$0xff]
        %v234 = vld [vmem:[#allocation5 + $0x18] sm:$0xff]
        %v235 = vld [vmem:[#allocation5 + $0x20] sm:$0xff]
        %v236 = vld [vmem:[#allocation5 + $0x28] sm:$0xff]
        %v237 = vld [vmem:[#allocation5 + $0x30] sm:$0xff]
        %v238 = vld [vmem:[#allocation5 + $0x38] sm:$0xff]
        %vm239 = vcmask 523264
        %v241 = vsel %vm239, %v230, 0
        %243 = vmatprep.subr.mxu0 0.0
        %244 = vmatpush1.msra.mxu0 %v231
        %245 = vmatprep.subr.mxu0 0.0
        %246 = vmatpush1.msra.mxu0 %v232
        %247 = vmatprep.subr.mxu0 0.0
        %248 = vmatpush1.msra.mxu0 %v233
        %249 = vmatprep.subr.mxu0 0.0
        %250 = vmatpush1.msra.mxu0 %v234
        %251 = vmatprep.subr.mxu0 0.0
        %252 = vmatpush1.msra.mxu0 %v235
        %253 = vmatprep.subr.mxu0 0.0
        %254 = vmatpush1.msra.mxu0 %v236
        %255 = vmatprep.subr.mxu0 0.0
        %256 = vmatpush1.msra.mxu0 %v237
        %257 = vmatprep.subr.mxu0 0.0
        %258 = vmatpush1.msra.mxu0 %v238
        %259 = vmatprep.subr.mxu0 0.0
        %260 = vmatpush1.msra.mxu0 0.0
        %261 = vmatprep.subr.mxu0 0.0
        %262 = vmatpush1.msra.mxu0 0.0
        %263 = vmatprep.subr.mxu0 0.0
        %264 = vmatpush1.msra.mxu0 0.0
        %265 = vmatprep.subr.mxu0 0.0
        %266 = vmatpush1.msra.mxu0 0.0
        %267 = vmatprep.subr.mxu0 0.0
        %268 = vmatpush1.msra.mxu0 0.0
        %269 = vmatprep.subr.mxu0 0.0
        %270 = vmatpush1.msra.mxu0 0.0
        %271 = vmatprep.subr.mxu0 0.0
        %272 = vmatpush1.msra.mxu0 0.0
        %273 = vmatprep.subr.mxu0 0.0
        %274 = vmatpush1.msra.mxu0 0.0
        %275 = vmatprep.subr.mxu0 0.0
        %276 = vmatpush1.msra.mxu0 0.0
        %277 = vmatprep.subr.mxu0 0.0
        %278 = vmatpush1.msra.mxu0 0.0
        %279 = vmatprep.subr.mxu0 0.0
        %280 = vmatpush1.msra.mxu0 0.0
        %281 = vmatprep.subr.mxu0 0.0
        %282 = vmatpush1.msra.mxu0 0.0
        %283 = vmatprep.subr.mxu0 0.0
        %284 = vmatpush1.msra.mxu0 0.0
        %285 = vmatprep.subr.mxu0 0.0
        %286 = vmatpush1.msra.mxu0 0.0
        %287 = vmatprep.subr.mxu0 0.0
        %288 = vmatpush1.msra.mxu0 0.0
        %289 = vmatprep.subr.mxu0 0.0
        %290 = vmatpush1.msra.mxu0 0.0
        %291 = vmatprep.subr.mxu0 0.0
        %292 = vmatpush1.msra.mxu0 0.0
        %293 = vmatprep.subr.mxu0 0.0
        %294 = vmatpush1.msra.mxu0 0.0
        %295 = vmatprep.subr.mxu0 0.0
        %296 = vmatpush1.msra.mxu0 0.0
        %297 = vmatprep.subr.mxu0 0.0
        %298 = vmatpush1.msra.mxu0 0.0
        %299 = vmatprep.subr.mxu0 0.0
        %300 = vmatpush1.msra.mxu0 0.0
        %301 = vmatprep.subr.mxu0 0.0
        %302 = vmatpush1.msra.mxu0 0.0
        %303 = vmatprep.subr.mxu0 0.0
        %304 = vmatpush1.msra.mxu0 0.0
        %305 = vmatprep.subr.mxu0 0.0
        %306 = vmatpush1.msra.mxu0 0.0
        %307 = vmatprep.mubr.f32.mxu0 0.0
        %308 = vmatmul.mubr.f32.gmra.mrb[0].mxu0 %v241
        %v309 = vpop.f32.mrb[0].mxu0
        %v310 = vadd.f32 0.0, %v309
        %v311 = vpop.f32.mrb[0].mxu0
        %312 = vdwg.mxu0
        %313 = vst [vmem:[%s219] sm:$0xff] %v310
        %v314 = vld [vmem:[#allocation8] sm:$0x1]
        %v315 = vrot.slane %v310, 4
        %v316 = vadd.f32 %v310, %v315
        %v317 = vrot.slane %v316, 2
        %v318 = vadd.f32 %v316, %v317
        %v319 = vrot.slane %v318, 1
        %v320 = vadd.f32 %v318, %v319
        %v321 = vadd.f32 %v314, %v320
        %322 = vst [vmem:[#allocation8] sm:$0x1] %v321
        %v323 = vld [vmem:[#allocation10] sm:$0x1]
        %v324 = vmul.f32 %v310, %v310
        %v325 = vrot.slane %v324, 4
        %v326 = vadd.f32 %v324, %v325
        %v327 = vrot.slane %v326, 2
        %v328 = vadd.f32 %v326, %v327
        %v329 = vrot.slane %v328, 1
        %v330 = vadd.f32 %v328, %v329
        %v331 = vadd.f32 %v323, %v330
        %332 = vst [vmem:[#allocation10] sm:$0x1] %v331
        %s333 = sand.u32 %s79, 1
        %s334 = scalar_lea.sflag [#allocation4], %s333
        %s335 = sand.u32 %s79, 1
        %s336 = smul.addr %s335, 8
        %s337 = scalar_lea.vmem [#allocation7], %s336
        // Predicated region
        $region41: #{tpu_custom_call.1} parent=27 // pred_check
          %p338 = pneg %p89
        $region42: #{tpu_custom_call.1} parent=27 // pred_check_branch
          %340 = sbr.rel (%p338) target = $region44
        $region43: #{tpu_custom_call.1} parent=27 // pred_region
          %s342 = ssub.s32 128, 128
          %343 = vsyncadd %s334, %s342
          %s344 = smul.addr %s24, 128
          %s345 = scalar_lea.hbm %s2, %s344
          %s347 = sshll.u32 %s337, 4
          %s348 = int_to_ptr.vmem [resolvable:$true] %s347
          %350 = dma.vmem_to_hbm [thread:$0]  %s348, 128, %s345, %s334
        $region44: #{tpu_custom_call.1} parent=27 // pred_fallthru
          _
        // Predicated region
        $region45: #{tpu_custom_call.1} parent=27 // pred_check
          %p351 = pneg %p110
        $region46: #{tpu_custom_call.1} parent=27 // pred_check_branch
          %353 = sbr.rel (%p351) target = $region48
        $region47: #{tpu_custom_call.1} parent=27 // pred_region
          %s355 = ssub.s32 16, 16
          %356 = vsyncadd [#allocation9], %s355
          %s358 = sshll.u32 [#allocation8], 4
          %s359 = int_to_ptr.vmem [resolvable:$true] %s358
          %361 = dma.vmem_to_hbm [thread:$0]  %s359, 16, %s3, [#allocation9]
        $region48: #{tpu_custom_call.1} parent=27 // pred_fallthru
          _
        // Predicated region
        $region49: #{tpu_custom_call.1} parent=27 // pred_check
          %p362 = pneg %p131
        $region50: #{tpu_custom_call.1} parent=27 // pred_check_branch
          %364 = sbr.rel (%p362) target = $region52
        $region51: #{tpu_custom_call.1} parent=27 // pred_region
          %s366 = ssub.s32 16, 16
          %367 = vsyncadd [#allocation9], %s366
          %s369 = sshll.u32 [#allocation10], 4
          %s370 = int_to_ptr.vmem [resolvable:$true] %s369
          %372 = dma.vmem_to_hbm [thread:$0]  %s370, 16, %s4, [#allocation9]
        $region52: #{tpu_custom_call.1} parent=27 // pred_fallthru
          _
        // Predicated region
        $region53: #{tpu_custom_call.1} parent=27 // pred_check
          %p373 = pneg %p110
        $region54: #{tpu_custom_call.1} parent=27 // pred_check_branch
          %375 = sbr.rel (%p373) target = $region56
        $region55: #{tpu_custom_call.1} parent=27 // pred_region
          %376 = dma.done [#allocation9], 16
        $region56: #{tpu_custom_call.1} parent=27 // pred_fallthru
          _
        // Predicated region
        $region57: #{tpu_custom_call.1} parent=27 // pred_check
          %p377 = pneg %p131
        $region58: #{tpu_custom_call.1} parent=27 // pred_check_branch
          %379 = sbr.rel (%p377) target = $region60
        $region59: #{tpu_custom_call.1} parent=27 // pred_region
          %380 = dma.done [#allocation9], 16
        $region60: #{tpu_custom_call.1} parent=27 // pred_fallthru
          _
      $region28: #{tpu_custom_call.1} parent=5 // pred_fallthru
        _
      %p381 = scmp.le.s32.totalorder 2, %s19
      // Predicated region
      $region61: #{tpu_custom_call.1} parent=5 // pred_check
        %p382 = pneg %p381
      $region62: #{tpu_custom_call.1} parent=5 // pred_check_branch
        %384 = sbr.rel (%p382) target = $region64
      $region63: #{tpu_custom_call.1} parent=5 // pred_region
        %s385 = ssub.s32 %s19, 2
        // Predicated region
        $region65: #{tpu_custom_call.1} parent=63 // pred_check
          %p386 = pneg %p95
        $region66: #{tpu_custom_call.1} parent=63 // pred_check_branch
          %388 = sbr.rel (%p386) target = $region68
        $region67: #{tpu_custom_call.1} parent=63 // pred_region
          %s389 = sand.u32 %s80, 1
          %s390 = scalar_lea.sflag [#allocation4], %s389
          %s391 = sand.u32 %s80, 1
          %s392 = smul.addr %s391, 8
          %s393 = scalar_lea.vmem [#allocation7], %s392
          %394 = dma.done %s390, 128
        $region68: #{tpu_custom_call.1} parent=63 // pred_fallthru
          _
      $region64: #{tpu_custom_call.1} parent=5 // pred_fallthru
        _
    $region6: #{tpu_custom_call.1} parent=1 // loop_footer
      %s23 = sadd.s32 1, %s19
    $region7: #{tpu_custom_call.1} parent=1 // loop_footer_branch
      %18 = sbr.rel target = $region3
    $region8: #{tpu_custom_call.1} parent=1 // loop_exit
      _
    %395 = vsyncpa [#allocation3], 1
    %s396 = scalar_lea.sflag [#allocation3], 1
    %397 = vsyncpa %s396, 1
    %398 = vsyncpa [#allocation6], 1
    %399 = vsyncpa [#allocation4], 1
    %s400 = scalar_lea.sflag [#allocation4], 1
    %401 = vsyncpa %s400, 1
    %402 = vsyncpa [#allocation9], 1

</llo_original>
